<compile_context>
chip_gen: v6e
topology: v6e:2x2x1
jax: 0.10.0
libtpu: 0.0.40
codegen_flags: <defaults>
</compile_context>

<pallas_src>
import jax
import jax.numpy as jnp
from jax import lax
from jax.experimental import pallas as pl
from jax.experimental.pallas import tpu as pltpu


# --------------------------------------------------------------------------- #
# Kernels
# --------------------------------------------------------------------------- #

def _input_proj_kernel(x_ref, wx_ref, b_ref, out_ref):
    """One projection GEMM chunk: (rows, Ep) @ (Ep, 4Hp) + folded bias."""
    x = x_ref[...].astype(wx_ref.dtype)
    acc = jnp.dot(x, wx_ref[...], preferred_element_type=jnp.float32) + b_ref[...]
    out_ref[...] = acc.astype(out_ref.dtype)


def _recurrent_kernel(xp_ref, wh_ref, h0_ref, c0_ref,
                      h_seq_ref, c_seq_ref, h_scr, c_scr):
    """TT timesteps of the recurrence per grid step.

    h/c are carried in vregs (fori_loop carry) within the chunk and in f32
    VMEM scratch across time chunks.  Wh stays VMEM-resident.
    """
    tc = pl.program_id(1)
    tt = xp_ref.shape[0]
    hp = h_scr.shape[-1]

    @pl.when(tc == 0)
    def _():
        h_scr[...] = h0_ref[...].astype(jnp.float32)
        c_scr[...] = c0_ref[...].astype(jnp.float32)

    w = wh_ref[...]

    def step(t, carry):
        h, c = carry
        # xp already holds x@Wx + (bx+bh); only the serial h@Wh happens here.
        # NOTE: h is recast to w.dtype (bf16 by default) each step; use
        # param_dtype=f32 for very long sequences if tighter accuracy is needed.
        gates = xp_ref[t].astype(jnp.float32) + jnp.dot(
            h.astype(w.dtype), w, preferred_element_type=jnp.float32)
        # Gate packing (i, f, o, g): one contiguous sigmoid slab + one tanh slab.
        sig = jax.nn.sigmoid(gates[:, :3 * hp])
        g_gate = jnp.tanh(gates[:, 3 * hp:])
        i_gate = sig[:, 0 * hp:1 * hp]
        f_gate = sig[:, 1 * hp:2 * hp]
        o_gate = sig[:, 2 * hp:3 * hp]
        c_new = f_gate * c + i_gate * g_gate
        h_new = o_gate * jnp.tanh(c_new)
        h_seq_ref[t] = h_new.astype(h_seq_ref.dtype)
        c_seq_ref[t] = c_new.astype(c_seq_ref.dtype)
        return h_new, c_new

    h_fin, c_fin = lax.fori_loop(0, tt, step, (h_scr[...], c_scr[...]))
    h_scr[...] = h_fin
    c_scr[...] = c_fin


# --------------------------------------------------------------------------- #
# Wrappers
# --------------------------------------------------------------------------- #

def _round_up(x, m):
    return ((x + m - 1) // m) * m


def _physical_vmem_bytes():
    try:
        info = pltpu.get_tpu_info()
        return int(getattr(info, "vmem_capacity_bytes", 128 << 20))
    except Exception:
        return 128 << 20


def _vmem_limit_bytes(resident_bytes, streamed_bytes_per_step):
    """Generation-aware VMEM budget.

    Never below resident + double-buffered streamed bytes; capped at ~3/4 of
    physical VMEM (≈96 MiB on v5e/v6e, ≈48 MiB on v7x).
    """
    phys = _physical_vmem_bytes()
    need = int(resident_bytes + 2 * streamed_bytes_per_step) + (2 << 20)
    want = max(32 << 20, 2 * need)
    cap = (phys * 3) // 4
    return int(max(need, min(want, cap)))


def pack_params(params, ep, hp, param_dtype):
    """Pack 8 per-gate Linears into (Ep,4Hp)/(Hp,4Hp) weights + folded (1,4Hp) bias.

    Gate column order is (i, f, o, g); padding rows/columns are zero so padded
    lanes stay inert through the recurrence.
    """
    e, h = params["x2i"][0].shape
    wx = jnp.zeros((ep, 4 * hp), jnp.float32)
    wh = jnp.zeros((hp, 4 * hp), jnp.float32)
    b = jnp.zeros((1, 4 * hp), jnp.float32)
    for gi, gname in enumerate(("i", "f", "o", "g")):
        w_x, b_x = params["x2" + gname]
        w_h, b_h = params["h2" + gname]
        col = gi * hp
        wx = wx.at[:e, col:col + h].set(w_x.astype(jnp.float32))
        wh = wh.at[:h, col:col + h].set(w_h.astype(jnp.float32))
        b = b.at[0, col:col + h].set((b_x + b_h).astype(jnp.float32))
    return wx.astype(param_dtype), wh.astype(param_dtype), b


def lstm_seq(x_seq, h0, c0, params, *, param_dtype=jnp.bfloat16,
             out_dtype=None, time_chunk=None):
    """Run the LSTM cell over a whole sequence.

    x_seq: (T, B, E); h0, c0: (B, H).  Returns (h_seq, c_seq): (T, B, H) each.
    """
    t_len, b, e = x_seq.shape
    h = h0.shape[-1]
    out_dtype = out_dtype or x_seq.dtype
    w_item = jnp.dtype(param_dtype).itemsize
    inter_dtype = param_dtype                 # intermediates in bf16 by default
    inter_item = jnp.dtype(inter_dtype).itemsize
    x_item = jnp.dtype(x_seq.dtype).itemsize

    ep = _round_up(e, 128)
    hp = _round_up(h, 128)
    bp = _round_up(b, 8)

    # Batch blocking: >=2 blocks whenever bp >= 16 so v7x's two TensorCores can
    # both work on the "parallel" batch axis; block capped at 128 rows.
    if bp >= 16:
        bp = _round_up(bp, 16)
        b_blk = min(128, bp // 2)
        bp = _round_up(bp, b_blk)
    else:
        b_blk = bp
    nb = bp // b_blk

    phys = _physical_vmem_bytes()
    wx_bytes = ep * 4 * hp * w_item
    wh_bytes = hp * 4 * hp * w_item

    # --- recurrence time chunk (amortizes ~0.35us/grid-step overhead) ---
    per_step_stream = (b_blk * 4 * hp + 2 * b_blk * hp) * inter_item   # xp + h + c
    stream_budget = max((phys * 3) // 4 - wh_bytes - 4 * b_blk * hp * 4 - (4 << 20),
                        per_step_stream)
    tt = int(min(t_len, 32, max(1, stream_budget // (2 * per_step_stream))))
    if time_chunk is not None:
        tt = max(1, min(int(time_chunk), t_len))

    # --- projection time chunk: a multiple of tt targeting ~1024-row GEMMs ---
    k = max(1, 1024 // max(1, tt * bp))
    k = min(k, max(1, _round_up(t_len, tt) // tt))
    while k > 1 and (wx_bytes + 2 * (tt * k) * bp * (ep * x_item + 4 * hp * inter_item)
                     > (phys * 3) // 4):
        k -= 1
    tp = tt * k
    t_pad = _round_up(t_len, tp)

    wx, wh, bias = pack_params(params, ep, hp, param_dtype)

    # Pad x only when needed (skips one full HBM pass over x when aligned).
    if (t_pad, bp, ep) == (t_len, b, e):
        x_in = x_seq.reshape(t_len * bp, ep)
    else:
        x_pad = jnp.zeros((t_pad, bp, ep), x_seq.dtype)
        x_pad = x_pad.at[:t_len, :b, :e].set(x_seq)
        x_in = x_pad.reshape(t_pad * bp, ep)

    h0_pad = h0.astype(jnp.float32)
    c0_pad = c0.astype(jnp.float32)
    if (bp, hp) != (b, h):
        h0_pad = jnp.zeros((bp, hp), jnp.float32).at[:b, :h].set(h0_pad)
        c0_pad = jnp.zeros((bp, hp), jnp.float32).at[:b, :h].set(c0_pad)

    # ---------------- hoisted input projection: one large GEMM ---------------- #
    rows = tp * bp
    proj_vmem = _vmem_limit_bytes(
        wx_bytes + 4 * hp * 4,
        rows * ep * x_item + rows * 4 * hp * inter_item)
    xproj = pl.pallas_call(
        _input_proj_kernel,
        out_shape=jax.ShapeDtypeStruct((t_pad * bp, 4 * hp), inter_dtype),
        grid=(t_pad // tp,),
        in_specs=[
            pl.BlockSpec((rows, ep), lambda s: (s, 0)),
            pl.BlockSpec((ep, 4 * hp), lambda s: (0, 0)),   # Wx VMEM-resident
            pl.BlockSpec((1, 4 * hp), lambda s: (0, 0)),    # folded bias resident
        ],
        out_specs=pl.BlockSpec((rows, 4 * hp), lambda s: (s, 0)),
        compiler_params=pltpu.CompilerParams(
            dimension_semantics=("parallel",),
            vmem_limit_bytes=proj_vmem),
    )(x_in, wx, bias).reshape(t_pad, bp, 4 * hp)

    # ---------------- serial recurrence, TT timesteps per grid step ----------- #
    # TODO(synk): for v7x with hp >~ 2048 (bf16 Wh > ~32 MiB of its 64 MiB VMEM)
    # add an N-tiled Wh path (gate-column grid axis + gates scratch) instead of
    # full Wh residency.
    n_tc = t_pad // tt
    rec_vmem = _vmem_limit_bytes(
        wh_bytes + 4 * b_blk * hp * 4,                      # Wh + h0/c0 + scratch
        tt * b_blk * 4 * hp * inter_item + 2 * tt * b_blk * hp * inter_item)
    h_seq, c_seq = pl.pallas_call(
        _recurrent_kernel,
        out_shape=(jax.ShapeDtypeStruct((t_pad, bp, hp), inter_dtype),
                   jax.ShapeDtypeStruct((t_pad, bp, hp), inter_dtype)),
        grid=(nb, n_tc),
        in_specs=[
            pl.BlockSpec((tt, b_blk, 4 * hp), lambda bi, tc: (tc, bi, 0)),
            pl.BlockSpec((hp, 4 * hp), lambda bi, tc: (0, 0)),   # Wh resident
            pl.BlockSpec((b_blk, hp), lambda bi, tc: (bi, 0)),
            pl.BlockSpec((b_blk, hp), lambda bi, tc: (bi, 0)),
        ],
        out_specs=(pl.BlockSpec((tt, b_blk, hp), lambda bi, tc: (tc, bi, 0)),
                   pl.BlockSpec((tt, b_blk, hp), lambda bi, tc: (tc, bi, 0))),
        scratch_shapes=[pltpu.VMEM((b_blk, hp), jnp.float32),
                        pltpu.VMEM((b_blk, hp), jnp.float32)],
        compiler_params=pltpu.CompilerParams(
            dimension_semantics=("parallel", "arbitrary"),
            vmem_limit_bytes=rec_vmem),
    )(xproj, wh, h0_pad, c0_pad)

    h_seq = h_seq[:t_len, :b, :h].astype(out_dtype)
    c_seq = c_seq[:t_len, :b, :h].astype(out_dtype)
    return h_seq, c_seq


def lstm_cell(x, h_prev, c_prev, params, **kwargs):
    """Single-cell forward, matching LSTMScratch.forward(x, h_prev, c_prev)."""
    h_seq, c_seq = lstm_seq(x[None], h_prev, c_prev, params, **kwargs)
    return h_seq[0], c_seq[0]


# --------------------------------------------------------------------------- #
# Parameters & pure-JAX reference
# --------------------------------------------------------------------------- #

def _uniform_init(key, shape, fan_in, dtype=jnp.float32):
    bound = 1.0 / jnp.sqrt(jnp.array(fan_in, dtype))
    return jax.random.uniform(key, shape, dtype, minval=-bound, maxval=bound)


def make_params(key, embedding_size, hidden_size, bias=True, dtype=jnp.float32):
    """Per-gate weights equivalent to the 8 nn.Linear layers (W stored as (in,out))."""
    keys = jax.random.split(key, 16)
    params, ki = {}, 0
    for name in ("x2i", "x2f", "x2g", "x2o"):
        w = _uniform_init(keys[ki], (hidden_size, embedding_size),
                          embedding_size, dtype).T
        ki += 1
        bb = (_uniform_init(keys[ki], (hidden_size,), embedding_size, dtype)
              if bias else jnp.zeros((hidden_size,), dtype))
        ki += 1
        params[name] = (w, bb)
    for name in ("h2i", "h2f", "h2g", "h2o"):
        w = _uniform_init(keys[ki], (hidden_size, hidden_size),
                          hidden_size, dtype).T
        ki += 1
        bb = (_uniform_init(keys[ki], (hidden_size,), hidden_size, dtype)
              if bias else jnp.zeros((hidden_size,), dtype))
        ki += 1
        params[name] = (w, bb)
    return params


def lstm_cell_ref(x, h_prev, c_prev, params):
    def lin(name, inp):
        w, bb = params[name]
        return inp @ w + bb
    i = jax.nn.sigmoid(lin("x2i", x) + lin("h2i", h_prev))
    f = jax.nn.sigmoid(lin("x2f", x) + lin("h2f", h_prev))
    g = jnp.tanh(lin("x2g", x) + lin("h2g", h_prev))
    o = jax.nn.sigmoid(lin("x2o", x) + lin("h2o", h_prev))
    c = f * c_prev + i * g
    h = o * jnp.tanh(c)
    return h, c


def lstm_seq_ref(x_seq, h0, c0, params):
    def step(carry, x):
        h, c = lstm_cell_ref(x, carry[0], carry[1], params)
        return (h, c), (h, c)
    _, (hs, cs) = jax.lax.scan(step, (h0, c0), x_seq)
    return hs, cs


# --------------------------------------------------------------------------- #
# Self-test
# --------------------------------------------------------------------------- #

if __name__ == "__main__":
    batch, embedding_size, hidden_size, seq_len = 8, 32, 32, 6
    key = jax.random.PRNGKey(0)
    k_param, k_x, k_h, k_c, k_xs, k_xl = jax.random.split(key, 6)

    params = make_params(k_param, embedding_size, hidden_size, bias=True)

    # 1) Single-cell forward (module semantics), f32 weights -> tight tolerance.
    x = jax.random.normal(k_x, (batch, embedding_size), jnp.float32)
    h_prev = jax.random.normal(k_h, (batch, hidden_size), jnp.float32)
    c_prev = jax.random.normal(k_c, (batch, hidden_size), jnp.float32)

    h_out, c_out = lstm_cell(x, h_prev, c_prev, params, param_dtype=jnp.float32)
    jax.block_until_ready((h_out, c_out))
    h_ref, c_ref = lstm_cell_ref(x, h_prev, c_prev, params)
    assert jnp.allclose(h_out, h_ref, atol=1e-4, rtol=1e-4)
    assert jnp.allclose(c_out, c_ref, atol=1e-4, rtol=1e-4)

    # 2) Fused sequence forward, default bf16 weights/intermediates.
    x_seq = jax.random.normal(k_xs, (seq_len, batch, embedding_size), jnp.float32)
    h_seq, c_seq = lstm_seq(x_seq, h_prev, c_prev, params)
    jax.block_until_ready((h_seq, c_seq))
    h_sref, c_sref = lstm_seq_ref(x_seq, h_prev, c_prev, params)
    assert jnp.allclose(h_seq, h_sref, atol=5e-2, rtol=5e-2)
    assert jnp.allclose(c_seq, c_sref, atol=5e-2, rtol=5e-2)

    # 3) Time-chunked + time-padded path (T=20, chunk=8 -> padded to 24), f32.
    seq_len_l = 20
    x_seq_l = jax.random.normal(k_xl, (seq_len_l, batch, embedding_size),
                                jnp.float32)
    h_seq_l, c_seq_l = lstm_seq(x_seq_l, h_prev, c_prev, params,
                                param_dtype=jnp.float32, time_chunk=8)
    jax.block_until_ready((h_seq_l, c_seq_l))
    h_lref, c_lref = lstm_seq_ref(x_seq_l, h_prev, c_prev, params)
    assert jnp.allclose(h_seq_l, h_lref, atol=1e-3, rtol=1e-3)
    assert jnp.allclose(c_seq_l, c_lref, atol=1e-3, rtol=1e-3)

    print("KERNEL_OK")
</pallas_src>

<mosaic_0001>
module attributes {stable_mosaic.version = 11 : i64} {
  func.func @_input_proj_kernel(%arg0: i32, %arg1: memref<8x128xf32, #tpu.memory_space<vmem>>, %arg2: memref<128x512xf32, #tpu.memory_space<vmem>>, %arg3: memref<1x512xf32, #tpu.memory_space<vmem>>, %arg4: memref<8x512xf32, #tpu.memory_space<vmem>>) attributes {dimension_semantics = [#tpu.dimension_semantics<parallel>], iteration_bounds = array<i64: 1>, scalar_prefetch = 0 : i64, scratch_operands = 0 : i64, tpu.core_type = #tpu.core_type<tc>, window_params = [{transform_indices = @transform_0, window_bounds = array<i64: 8, 128>}, {pipeline_mode = #tpu.pipeline_mode<synchronous>, transform_indices = @transform_1, window_bounds = array<i64: 128, 512>}, {pipeline_mode = #tpu.pipeline_mode<synchronous>, transform_indices = @transform_2, window_bounds = array<i64: 1, 512>}, {transform_indices = @transform_3, window_bounds = array<i64: 8, 512>}]} {
    %c0 = arith.constant 0 : index
    %c0_0 = arith.constant 0 : index
    %0 = vector.load %arg1[%c0, %c0_0] : memref<8x128xf32, #tpu.memory_space<vmem>>, vector<8x128xf32>
    %c0_1 = arith.constant 0 : index
    %c0_2 = arith.constant 0 : index
    %1 = vector.load %arg2[%c0_1, %c0_2] : memref<128x512xf32, #tpu.memory_space<vmem>>, vector<128x512xf32>
    %cst = arith.constant dense<0.000000e+00> : vector<8x512xf32>
    %2 = tpu.matmul %0, %1, %cst {dimension_numbers = #tpu.dot_dimension_numbers<[1], [0], [0], [1], [0, 0, 1, 1], [], []>} : vector<8x128xf32>, vector<128x512xf32>, vector<8x512xf32> -> vector<8x512xf32>
    %c0_3 = arith.constant 0 : index
    %c0_4 = arith.constant 0 : index
    %3 = vector.load %arg3[%c0_3, %c0_4] : memref<1x512xf32, #tpu.memory_space<vmem>>, vector<1x512xf32>
    %4 = vector.broadcast %3 : vector<1x512xf32> to vector<8x512xf32>
    %5 = arith.addf %2, %4 : vector<8x512xf32>
    %c0_5 = arith.constant 0 : index
    %c0_6 = arith.constant 0 : index
    %6 = vector.load %arg4[%c0_5, %c0_6] : memref<8x512xf32, #tpu.memory_space<vmem>>, vector<8x512xf32>
    tpu.vector_store %arg4[%c0_5, %c0_6], %5 {strides = array<i32>} : memref<8x512xf32, #tpu.memory_space<vmem>>, vector<8x512xf32>,
    return
  }
  func.func @transform_0(%arg0: i32) -> (i32, i32) {
    %c0_i32 = arith.constant 0 : i32
    %c0_i32_0 = arith.constant 0 : i32
    return %arg0, %c0_i32 : i32, i32
  }
  func.func @transform_1(%arg0: i32) -> (i32, i32) {
    %c0_i32 = arith.constant 0 : i32
    %c0_i32_0 = arith.constant 0 : i32
    %c0_i32_1 = arith.constant 0 : i32
    return %c0_i32, %c0_i32_0 : i32, i32
  }
  func.func @transform_2(%arg0: i32) -> (i32, i32) {
    %c0_i32 = arith.constant 0 : i32
    %c0_i32_0 = arith.constant 0 : i32
    %c0_i32_1 = arith.constant 0 : i32
    return %c0_i32, %c0_i32_0 : i32, i32
  }
  func.func @transform_3(%arg0: i32) -> (i32, i32) {
    %c0_i32 = arith.constant 0 : i32
    %c0_i32_0 = arith.constant 0 : i32
    return %arg0, %c0_i32 : i32, i32
  }
}

</mosaic_0001>

<llo_original>
// kernel: tpu_custom_call.1
$region0: #{tpu_custom_call.1}
  #allocation0 [shape = 'u32[]', space=smem, size = 0x4, offset = 0x4, fixed_abs, tag = 'smem constant byte address 0x4 - core index']
  #allocation1 [shape = 'u32[144,128]{1,0:T(1,128)}', space=vmem, size = 0x12000, scoped, tag = 'internal scratch']
  %s0 = inlined_call_operand.hbm [shape: f32[8,128], index: 0, kind: input, shape index: {}]
  %s1 = inlined_call_operand.hbm [shape: f32[128,512], index: 1, kind: input, shape index: {}]
  %s2 = inlined_call_operand.hbm [shape: f32[1,512], index: 2, kind: input, shape index: {}]
  %s3 = inlined_call_operand.hbm [shape: f32[8,512], index: 3, kind: output, shape index: {}]
  %s4 = sld [smem:[#allocation0]]
  $region34: #{tpu_custom_call.1} parent=0
    _
  %s6 = ssub.s32 1, %s4
  %s7 = scalar_select 0, %s6, %s4
  $region1: #{tpu_custom_call.1} parent=0
    #allocation2 [shape = 'u8[4096]{0}', space=vmem, size = 0x1000, scoped, tag = 'input window, operand 0, single buffered']
    #allocation3 [shape = 's32[1]{0}', space=sflag, size = 0x4, scoped, tag = 'scoped memory for tpu_custom_call.1']
    #allocation4 [shape = 's32[1]{0}', space=sflag, size = 0x4, scoped, tag = 'scoped memory for tpu_custom_call.1']
    #allocation5 [shape = 'u8[262144]{0}', space=vmem, size = 0x40000, scoped, tag = 'input window, operand 1, single buffered']
    #allocation6 [shape = 's32[1]{0}', space=sflag, size = 0x4, scoped, tag = 'scoped memory for tpu_custom_call.1']
    #allocation7 [shape = 'u8[2048]{0}', space=vmem, size = 0x800, scoped, tag = 'input window, operand 2, single buffered']
    #allocation8 [shape = 'u8[16384]{0}', space=vmem, size = 0x4000, scoped, tag = 'output window, operand 0, single buffered']
    %8 = vsyncpa [#allocation3], 0
    %9 = vsyncpa [#allocation6], 0
    %10 = vsyncpa [#allocation4], 0
    // Predicated region
    $region2: #{tpu_custom_call.1} parent=1 // pred_check
      _
    $region3: #{tpu_custom_call.1} parent=1 // pred_check_branch
      %12 = sbr.rel (0) target = $region5
    $region4: #{tpu_custom_call.1} parent=1 // pred_region
      %s14 = ssub.s32 128, 128
      %15 = vsyncadd [#allocation3], %s14
      %s17 = sshll.u32 [#allocation2], 4
      %s18 = int_to_ptr.vmem [resolvable:$true] %s17
      %20 = dma.hbm_to_vmem [thread:$0]  %s0, 128, %s18, [#allocation3]
    $region5: #{tpu_custom_call.1} parent=1 // pred_fallthru
      _
    // Predicated region
    $region6: #{tpu_custom_call.1} parent=1 // pred_check
      _
    $region7: #{tpu_custom_call.1} parent=1 // pred_check_branch
      %22 = sbr.rel (0) target = $region9
    $region8: #{tpu_custom_call.1} parent=1 // pred_region
      %s24 = ssub.s32 8192, 8192
      %25 = vsyncadd [#allocation6], %s24
      %s26 = sshll.u32 [#allocation5], 4
      %s27 = int_to_ptr.vmem [resolvable:$true] %s26
      %32 = dma.hbm_to_vmem [thread:$0]  %s1, 8192, %s27, [#allocation6], 512, 512, 32
    $region9: #{tpu_custom_call.1} parent=1 // pred_fallthru
      _
    // Predicated region
    $region10: #{tpu_custom_call.1} parent=1 // pred_check
      _
    $region11: #{tpu_custom_call.1} parent=1 // pred_check_branch
      %34 = sbr.rel (0) target = $region13
    $region12: #{tpu_custom_call.1} parent=1 // pred_region
      %s36 = ssub.s32 64, 64
      %37 = vsyncadd [#allocation6], %s36
      %s39 = sshll.u32 [#allocation7], 4
      %s40 = int_to_ptr.vmem [resolvable:$true] %s39
      %42 = dma.hbm_to_vmem [thread:$0]  %s2, 64, %s40, [#allocation6]
    $region13: #{tpu_custom_call.1} parent=1 // pred_fallthru
      _
    // Predicated region
    $region14: #{tpu_custom_call.1} parent=1 // pred_check
      _
    $region15: #{tpu_custom_call.1} parent=1 // pred_check_branch
      %44 = sbr.rel (0) target = $region17
    $region16: #{tpu_custom_call.1} parent=1 // pred_region
      %45 = dma.done [#allocation3], 128
    $region17: #{tpu_custom_call.1} parent=1 // pred_fallthru
      _
    // Predicated region
    $region18: #{tpu_custom_call.1} parent=1 // pred_check
      _
    $region19: #{tpu_custom_call.1} parent=1 // pred_check_branch
      %47 = sbr.rel (0) target = $region21
    $region20: #{tpu_custom_call.1} parent=1 // pred_region
      %48 = dma.done [#allocation6], 8192
    $region21: #{tpu_custom_call.1} parent=1 // pred_fallthru
      _
    // Predicated region
    $region22: #{tpu_custom_call.1} parent=1 // pred_check
      _
    $region23: #{tpu_custom_call.1} parent=1 // pred_check_branch
      %50 = sbr.rel (0) target = $region25
    $region24: #{tpu_custom_call.1} parent=1 // pred_region
      %51 = dma.done [#allocation6], 64
    $region25: #{tpu_custom_call.1} parent=1 // pred_fallthru
      _
    %v52 = vld [vmem:[#allocation2] sm:$0xff]
    %v53 = vld [vmem:[#allocation5] sm:$0xff]
    %v54 = vld [vmem:[#allocation5 + $0x8] sm:$0xff]
    %v55 = vld [vmem:[#allocation5 + $0x10] sm:$0xff]
    %v56 = vld [vmem:[#allocation5 + $0x18] sm:$0xff]
    %v57 = vld [vmem:[#allocation5 + $0x20] sm:$0xff]
    %v58 = vld [vmem:[#allocation5 + $0x28] sm:$0xff]
    %v59 = vld [vmem:[#allocation5 + $0x30] sm:$0xff]
    %v60 = vld [vmem:[#allocation5 + $0x38] sm:$0xff]
    %v61 = vld [vmem:[#allocation5 + $0x40] sm:$0xff]
    %v62 = vld [vmem:[#allocation5 + $0x48] sm:$0xff]
    %v63 = vld [vmem:[#allocation5 + $0x50] sm:$0xff]
    %v64 = vld [vmem:[#allocation5 + $0x58] sm:$0xff]
    %v65 = vld [vmem:[#allocation5 + $0x60] sm:$0xff]
    %v66 = vld [vmem:[#allocation5 + $0x68] sm:$0xff]
    %v67 = vld [vmem:[#allocation5 + $0x70] sm:$0xff]
    %v68 = vld [vmem:[#allocation5 + $0x78] sm:$0xff]
    %v69 = vld [vmem:[#allocation5 + $0x80] sm:$0xff]
    %v70 = vld [vmem:[#allocation5 + $0x88] sm:$0xff]
    %v71 = vld [vmem:[#allocation5 + $0x90] sm:$0xff]
    %v72 = vld [vmem:[#allocation5 + $0x98] sm:$0xff]
    %v73 = vld [vmem:[#allocation5 + $0xa0] sm:$0xff]
    %v74 = vld [vmem:[#allocation5 + $0xa8] sm:$0xff]
    %v75 = vld [vmem:[#allocation5 + $0xb0] sm:$0xff]
    %v76 = vld [vmem:[#allocation5 + $0xb8] sm:$0xff]
    %v77 = vld [vmem:[#allocation5 + $0xc0] sm:$0xff]
    %v78 = vld [vmem:[#allocation5 + $0xc8] sm:$0xff]
    %v79 = vld [vmem:[#allocation5 + $0xd0] sm:$0xff]
    %v80 = vld [vmem:[#allocation5 + $0xd8] sm:$0xff]
    %v81 = vld [vmem:[#allocation5 + $0xe0] sm:$0xff]
    %v82 = vld [vmem:[#allocation5 + $0xe8] sm:$0xff]
    %v83 = vld [vmem:[#allocation5 + $0xf0] sm:$0xff]
    %v84 = vld [vmem:[#allocation5 + $0xf8] sm:$0xff]
    %v85 = vld [vmem:[#allocation5 + $0x100] sm:$0xff]
    %v86 = vld [vmem:[#allocation5 + $0x108] sm:$0xff]
    %v87 = vld [vmem:[#allocation5 + $0x110] sm:$0xff]
    %v88 = vld [vmem:[#allocation5 + $0x118] sm:$0xff]
    %v89 = vld [vmem:[#allocation5 + $0x120] sm:$0xff]
    %v90 = vld [vmem:[#allocation5 + $0x128] sm:$0xff]
    %v91 = vld [vmem:[#allocation5 + $0x130] sm:$0xff]
    %v92 = vld [vmem:[#allocation5 + $0x138] sm:$0xff]
    %v93 = vld [vmem:[#allocation5 + $0x140] sm:$0xff]
    %v94 = vld [vmem:[#allocation5 + $0x148] sm:$0xff]
    %v95 = vld [vmem:[#allocation5 + $0x150] sm:$0xff]
    %v96 = vld [vmem:[#allocation5 + $0x158] sm:$0xff]
    %v97 = vld [vmem:[#allocation5 + $0x160] sm:$0xff]
    %v98 = vld [vmem:[#allocation5 + $0x168] sm:$0xff]
    %v99 = vld [vmem:[#allocation5 + $0x170] sm:$0xff]
    %v100 = vld [vmem:[#allocation5 + $0x178] sm:$0xff]
    %v101 = vld [vmem:[#allocation5 + $0x180] sm:$0xff]
    %v102 = vld [vmem:[#allocation5 + $0x188] sm:$0xff]
    %v103 = vld [vmem:[#allocation5 + $0x190] sm:$0xff]
    %v104 = vld [vmem:[#allocation5 + $0x198] sm:$0xff]
    %v105 = vld [vmem:[#allocation5 + $0x1a0] sm:$0xff]
    %v106 = vld [vmem:[#allocation5 + $0x1a8] sm:$0xff]
    %v107 = vld [vmem:[#allocation5 + $0x1b0] sm:$0xff]
    %v108 = vld [vmem:[#allocation5 + $0x1b8] sm:$0xff]
    %v109 = vld [vmem:[#allocation5 + $0x1c0] sm:$0xff]
    %v110 = vld [vmem:[#allocation5 + $0x1c8] sm:$0xff]
    %v111 = vld [vmem:[#allocation5 + $0x1d0] sm:$0xff]
    %v112 = vld [vmem:[#allocation5 + $0x1d8] sm:$0xff]
    %v113 = vld [vmem:[#allocation5 + $0x1e0] sm:$0xff]
    %v114 = vld [vmem:[#allocation5 + $0x1e8] sm:$0xff]
    %v115 = vld [vmem:[#allocation5 + $0x1f0] sm:$0xff]
    %v116 = vld [vmem:[#allocation5 + $0x1f8] sm:$0xff]
    %v117 = vld [vmem:[#allocation7] sm:$0xf]
    %v119 = vlaneseq
    %v120 = vshrl.u32 %v119, 7
    %v121 = vsub.s32 0, %v120
    %v122 = vrot.slane %v117, %v121
    %v123 = vlaneseq
    %v124 = vshrl.u32 %v123, 7
    %v125 = vsub.s32 1, %v124
    %v126 = vrot.slane %v117, %v125
    %v127 = vlaneseq
    %v128 = vshrl.u32 %v127, 7
    %v129 = vsub.s32 2, %v128
    %v130 = vrot.slane %v117, %v129
    %v131 = vlaneseq
    %v132 = vshrl.u32 %v131, 7
    %v133 = vsub.s32 3, %v132
    %v134 = vrot.slane %v117, %v133
    %139 = vmatprep.subr.mxu0 %v114
    %140 = vmatpush1.msra.mxu0 %v113
    %141 = vmatprep.subr.mxu0 %v110
    %142 = vmatpush1.msra.mxu0 %v109
    %143 = vmatprep.subr.mxu0 %v106
    %144 = vmatpush1.msra.mxu0 %v105
    %145 = vmatprep.subr.mxu0 %v102
    %146 = vmatpush1.msra.mxu0 %v101
    %147 = vmatprep.subr.mxu0 %v98
    %148 = vmatpush1.msra.mxu0 %v97
    %149 = vmatprep.subr.mxu0 %v94
    %150 = vmatpush1.msra.mxu0 %v93
    %151 = vmatprep.subr.mxu0 %v90
    %152 = vmatpush1.msra.mxu0 %v89
    %153 = vmatprep.subr.mxu0 %v86
    %154 = vmatpush1.msra.mxu0 %v85
    %155 = vmatprep.subr.mxu0 %v82
    %156 = vmatpush1.msra.mxu0 %v81
    %157 = vmatprep.subr.mxu0 %v78
    %158 = vmatpush1.msra.mxu0 %v77
    %159 = vmatprep.subr.mxu0 %v74
    %160 = vmatpush1.msra.mxu0 %v73
    %161 = vmatprep.subr.mxu0 %v70
    %162 = vmatpush1.msra.mxu0 %v69
    %163 = vmatprep.subr.mxu0 %v66
    %164 = vmatpush1.msra.mxu0 %v65
    %165 = vmatprep.subr.mxu0 %v62
    %166 = vmatpush1.msra.mxu0 %v61
    %167 = vmatprep.subr.mxu0 %v58
    %168 = vmatpush1.msra.mxu0 %v57
    %169 = vmatprep.subr.mxu0 %v54
    %170 = vmatpush1.msra.mxu0 %v53
    %171 = vmatprep.subr.mxu0 0.0
    %172 = vmatpush2.msra.mxu0 0.0
    %173 = vmatprep.subr.mxu0 0.0
    %174 = vmatpush2.msra.mxu0 0.0
    %175 = vmatprep.subr.mxu0 0.0
    %176 = vmatpush2.msra.mxu0 0.0
    %177 = vmatprep.subr.mxu0 0.0
    %178 = vmatpush2.msra.mxu0 0.0
    %179 = vmatprep.subr.mxu0 0.0
    %180 = vmatpush2.msra.mxu0 0.0
    %181 = vmatprep.subr.mxu0 0.0
    %182 = vmatpush2.msra.mxu0 0.0
    %183 = vmatprep.subr.mxu0 0.0
    %184 = vmatpush2.msra.mxu0 0.0
    %185 = vmatprep.subr.mxu0 0.0
    %186 = vmatpush2.msra.mxu0 0.0
    %187 = vmatprep.subr.mxu0 0.0
    %188 = vmatpush2.msra.mxu0 0.0
    %189 = vmatprep.subr.mxu0 0.0
    %190 = vmatpush2.msra.mxu0 0.0
    %191 = vmatprep.subr.mxu0 0.0
    %192 = vmatpush2.msra.mxu0 0.0
    %193 = vmatprep.subr.mxu0 0.0
    %194 = vmatpush2.msra.mxu0 0.0
    %195 = vmatprep.subr.mxu0 0.0
    %196 = vmatpush2.msra.mxu0 0.0
    %197 = vmatprep.subr.mxu0 0.0
    %198 = vmatpush2.msra.mxu0 0.0
    %199 = vmatprep.subr.mxu0 0.0
    %200 = vmatpush2.msra.mxu0 0.0
    %201 = vmatprep.subr.mxu0 0.0
    %202 = vmatpush2.msra.mxu0 0.0
    %203 = vmatprep.mubr.f32.mxu0 0.0
    %204 = vmatmul.mubr.f32.gmra.mxu0 %v52
    %v205 = vpop.f32.mrf.mxu0
    %v206 = vadd.f32 %v122, %v205
    %v207 = vpop.f32.mrf.mxu0
    %v208 = vadd.f32 %v126, %v207
    %209 = vdwg.mxu0
    %210 = vmatprep.subr.mxu0 %v116
    %211 = vmatpush1.msra.mxu0 %v115
    %212 = vmatprep.subr.mxu0 %v112
    %213 = vmatpush1.msra.mxu0 %v111
    %214 = vmatprep.subr.mxu0 %v108
    %215 = vmatpush1.msra.mxu0 %v107
    %216 = vmatprep.subr.mxu0 %v104
    %217 = vmatpush1.msra.mxu0 %v103
    %218 = vmatprep.subr.mxu0 %v100
    %219 = vmatpush1.msra.mxu0 %v99
    %220 = vmatprep.subr.mxu0 %v96
    %221 = vmatpush1.msra.mxu0 %v95
    %222 = vmatprep.subr.mxu0 %v92
    %223 = vmatpush1.msra.mxu0 %v91
    %224 = vmatprep.subr.mxu0 %v88
    %225 = vmatpush1.msra.mxu0 %v87
    %226 = vmatprep.subr.mxu0 %v84
    %227 = vmatpush1.msra.mxu0 %v83
    %228 = vmatprep.subr.mxu0 %v80
    %229 = vmatpush1.msra.mxu0 %v79
    %230 = vmatprep.subr.mxu0 %v76
    %231 = vmatpush1.msra.mxu0 %v75
    %232 = vmatprep.subr.mxu0 %v72
    %233 = vmatpush1.msra.mxu0 %v71
    %234 = vmatprep.subr.mxu0 %v68
    %235 = vmatpush1.msra.mxu0 %v67
    %236 = vmatprep.subr.mxu0 %v64
    %237 = vmatpush1.msra.mxu0 %v63
    %238 = vmatprep.subr.mxu0 %v60
    %239 = vmatpush1.msra.mxu0 %v59
    %240 = vmatprep.subr.mxu0 %v56
    %241 = vmatpush1.msra.mxu0 %v55
    %242 = vmatprep.subr.mxu0 0.0
    %243 = vmatpush2.msra.mxu0 0.0
    %244 = vmatprep.subr.mxu0 0.0
    %245 = vmatpush2.msra.mxu0 0.0
    %246 = vmatprep.subr.mxu0 0.0
    %247 = vmatpush2.msra.mxu0 0.0
    %248 = vmatprep.subr.mxu0 0.0
    %249 = vmatpush2.msra.mxu0 0.0
    %250 = vmatprep.subr.mxu0 0.0
    %251 = vmatpush2.msra.mxu0 0.0
    %252 = vmatprep.subr.mxu0 0.0
    %253 = vmatpush2.msra.mxu0 0.0
    %254 = vmatprep.subr.mxu0 0.0
    %255 = vmatpush2.msra.mxu0 0.0
    %256 = vmatprep.subr.mxu0 0.0
    %257 = vmatpush2.msra.mxu0 0.0
    %258 = vmatprep.subr.mxu0 0.0
    %259 = vmatpush2.msra.mxu0 0.0
    %260 = vmatprep.subr.mxu0 0.0
    %261 = vmatpush2.msra.mxu0 0.0
    %262 = vmatprep.subr.mxu0 0.0
    %263 = vmatpush2.msra.mxu0 0.0
    %264 = vmatprep.subr.mxu0 0.0
    %265 = vmatpush2.msra.mxu0 0.0
    %266 = vmatprep.subr.mxu0 0.0
    %267 = vmatpush2.msra.mxu0 0.0
    %268 = vmatprep.subr.mxu0 0.0
    %269 = vmatpush2.msra.mxu0 0.0
    %270 = vmatprep.subr.mxu0 0.0
    %271 = vmatpush2.msra.mxu0 0.0
    %272 = vmatprep.subr.mxu0 0.0
    %273 = vmatpush2.msra.mxu0 0.0
    %274 = vmatprep.mubr.f32.mxu0 0.0
    %275 = vmatmul.mubr.f32.gmra.mxu0 %v52
    %v276 = vpop.f32.mrf.mxu0
    %v277 = vadd.f32 %v130, %v276
    %v278 = vpop.f32.mrf.mxu0
    %v279 = vadd.f32 %v134, %v278
    %280 = vdwg.mxu0
    %281 = vst [vmem:[#allocation8] sm:$0xff] %v206
    %282 = vst [vmem:[#allocation8 + $0x8] sm:$0xff] %v208
    %283 = vst [vmem:[#allocation8 + $0x10] sm:$0xff] %v277
    %284 = vst [vmem:[#allocation8 + $0x18] sm:$0xff] %v279
    // Predicated region
    $region26: #{tpu_custom_call.1} parent=1 // pred_check
      _
    $region27: #{tpu_custom_call.1} parent=1 // pred_check_branch
      %286 = sbr.rel (0) target = $region29
    $region28: #{tpu_custom_call.1} parent=1 // pred_region
      %s288 = ssub.s32 512, 512
      %289 = vsyncadd [#allocation4], %s288
      %s291 = sshll.u32 [#allocation8], 4
      %s292 = int_to_ptr.vmem [resolvable:$true] %s291
      %294 = dma.vmem_to_hbm [thread:$0]  %s292, 512, %s3, [#allocation4]
    $region29: #{tpu_custom_call.1} parent=1 // pred_fallthru
      _
    // Predicated region
    $region30: #{tpu_custom_call.1} parent=1 // pred_check
      _
    $region31: #{tpu_custom_call.1} parent=1 // pred_check_branch
      %296 = sbr.rel (0) target = $region33
    $region32: #{tpu_custom_call.1} parent=1 // pred_region
      %297 = dma.done [#allocation4], 512
    $region33: #{tpu_custom_call.1} parent=1 // pred_fallthru
      _
    %298 = vsyncpa [#allocation3], 1
    %299 = vsyncpa [#allocation6], 1
    %300 = vsyncpa [#allocation4], 1

</llo_original>
